<compile_context>
chip_gen: v6e
topology: v6e:2x2x1
jax: 0.10.0
libtpu: 0.0.40
codegen_flags: <defaults>
</compile_context>

<pallas_src>
import functools

import jax
import jax.numpy as jnp
from jax.experimental import pallas as pl
from jax.experimental.pallas import tpu as pltpu


def _shortcut_kernel(x_ref, o_ref, *, tb, c_in, pad, w_in, ho, wo):
    """One grid step = TB batch elements.

    x_ref: (TB * C * H, W)        input rows, flattened (b, c, h)
    o_ref: (TB * Cout * Ho, Wo)   output rows, flattened (b, c_out, p)
    """
    c_out = c_in + 2 * pad

    # Even-H rows via a sublane-strided read (pure gather; odd rows untouched).
    # Row 2*i of the block is (b, c, h=2p) with i = (b*C + c)*Ho + p.
    xe = x_ref[pl.ds(0, tb * c_in * ho, stride=2), :]        # (TB*C*Ho, W)

    # Tiny one-hot selector (W, Wo), built in-kernel: sel[w, q] = (w == 2q).
    w_idx = jax.lax.broadcasted_iota(jnp.int32, (w_in, wo), 0)
    q_idx = jax.lax.broadcasted_iota(jnp.int32, (w_in, wo), 1)
    sel = (w_idx == 2 * q_idx).astype(x_ref.dtype)

    # Even-W selection as a small MXU matmul (K = W).  HIGHEST keeps the f32
    # copy exact (one-hot * value must not round through bf16).
    z = jnp.dot(
        xe,
        sel,
        preferred_element_type=jnp.float32,
        precision=jax.lax.Precision.HIGHEST,
    ).astype(o_ref.dtype)                                    # (TB*C*Ho, Wo)

    if pad > 0:
        zeros = jnp.zeros((pad * ho, wo), o_ref.dtype)

    # Per batch element: zero only the pad slabs, store the data slab once.
    # All offsets are multiples of Ho (8/16 for CIFAR & demo) -> sublane-aligned.
    for i in range(tb):
        base = i * c_out * ho
        if pad > 0:
            o_ref[base:base + pad * ho, :] = zeros
            o_ref[base + (pad + c_in) * ho:base + c_out * ho, :] = zeros
        o_ref[base + pad * ho:base + (pad + c_in) * ho, :] = (
            z[i * c_in * ho:(i + 1) * c_in * ho, :]
        )


def _pick_tb(b):
    # Batch as many elements per grid step as reasonable (amortizes grid-step
    # overhead, enlarges DMAs), but keep grid length >= 2 when B >= 2 so both
    # v7x TensorCores get work, and cap TB to bound the per-step VMEM footprint.
    tb = min(16, b)
    if b >= 2:
        tb = min(tb, max(1, b // 2))
    while b % tb:
        tb -= 1
    return tb


def lambda_layer(x, planes):
    """JAX wrapper reproducing LambdaLayer(option-A shortcut) semantics."""
    B, C, H, W = x.shape
    Ho, Wo = H // 2, W // 2            # NOTE: assumes even H, W (CIFAR sizes)
    pad = planes // 4
    Cout = C + 2 * pad

    TB = _pick_tb(B)

    # Free reshapes of contiguous NCHW to/from 2-D row views.
    x2 = x.reshape(B * C * H, W)

    kernel = functools.partial(
        _shortcut_kernel, tb=TB, c_in=C, pad=pad, w_in=W, ho=Ho, wo=Wo
    )

    out2 = pl.pallas_call(
        kernel,
        out_shape=jax.ShapeDtypeStruct((B * Cout * Ho, Wo), x.dtype),
        grid=(B // TB,),
        in_specs=[
            pl.BlockSpec((TB * C * H, W), lambda b: (b, 0)),
        ],
        out_specs=pl.BlockSpec((TB * Cout * Ho, Wo), lambda b: (b, 0)),
        compiler_params=pltpu.CompilerParams(
            dimension_semantics=("parallel",),   # batch-block axis -> megacore on v7x
        ),
    )(x2)

    return out2.reshape(B, Cout, Ho, Wo)


if __name__ == "__main__":
    key = jax.random.PRNGKey(0)
    B, C, H, W = 2, 4, 16, 16
    planes = 8  # shortcut target planes -> pad channels by planes // 4 = 2 each side

    x = jax.random.normal(key, (B, C, H, W), dtype=jnp.float32)

    out = jax.block_until_ready(lambda_layer(x, planes))

    # Pure-JAX reference of the PyTorch lambda:
    # F.pad(x[:, :, ::2, ::2], (0,0,0,0,planes//4,planes//4), "constant", 0)
    ref = jnp.pad(
        x[:, :, ::2, ::2],
        ((0, 0), (planes // 4, planes // 4), (0, 0), (0, 0)),
        mode="constant",
    )

    assert out.shape == (B, C + 2 * (planes // 4), H // 2, W // 2), out.shape
    assert out.dtype == x.dtype
    assert jnp.allclose(out, ref), float(jnp.max(jnp.abs(out - ref)))

    print("KERNEL_OK")
</pallas_src>

<mosaic_0001>
module attributes {stable_mosaic.version = 11 : i64} {
  func.func @_shortcut_kernel(%arg0: i32, %arg1: memref<64x16xf32, #tpu.memory_space<vmem>>, %arg2: memref<64x8xf32, #tpu.memory_space<vmem>>) attributes {dimension_semantics = [#tpu.dimension_semantics<parallel>], iteration_bounds = array<i64: 2>, scalar_prefetch = 0 : i64, scratch_operands = 0 : i64, tpu.core_type = #tpu.core_type<tc>, window_params = [{transform_indices = @transform_0, window_bounds = array<i64: 64, 16>}, {transform_indices = @transform_1, window_bounds = array<i64: 64, 8>}]} {
    %c0 = arith.constant 0 : index
    %c0_0 = arith.constant 0 : index
    %0 = tpu.strided_load %arg1[%c0, %c0_0] {strides = array<i32: 2, 1>} : memref<64x16xf32, #tpu.memory_space<vmem>>, vector<32x16xf32>
    %1 = tpu.iota {dimensions = array<i32: 0>} : vector<16x8xi32>
    %2 = tpu.iota {dimensions = array<i32: 1>} : vector<16x8xi32>
    %c2_i32 = arith.constant 2 : i32
    %3 = vector.broadcast %c2_i32 : i32 to vector<16x8xi32>
    %4 = arith.muli %3, %2 : vector<16x8xi32>
    %5 = arith.cmpi eq, %1, %4 : vector<16x8xi32>
    %6 = arith.extui %5 : vector<16x8xi1> to vector<16x8xi32>
    %7 = arith.sitofp %6 : vector<16x8xi32> to vector<16x8xf32>
    %cst = arith.constant dense<0.000000e+00> : vector<32x8xf32>
    %8 = tpu.matmul %0, %7, %cst {dimension_numbers = #tpu.dot_dimension_numbers<[1], [0], [0], [1], [0, 0, 1, 1], [], []>, precision = #tpu.contract_precision<fp32>} : vector<32x16xf32>, vector<16x8xf32>, vector<32x8xf32> -> vector<32x8xf32>
    %cst_1 = arith.constant 0.000000e+00 : f32
    %9 = vector.broadcast %cst_1 : f32 to vector<16x8xf32>
    %c0_2 = arith.constant 0 : index
    %c0_3 = arith.constant 0 : index
    %10 = vector.load %arg2[%c0_2, %c0_3] : memref<64x8xf32, #tpu.memory_space<vmem>>, vector<16x8xf32>
    tpu.vector_store %arg2[%c0_2, %c0_3], %9 {strides = array<i32>} : memref<64x8xf32, #tpu.memory_space<vmem>>, vector<16x8xf32>,
    %c48 = arith.constant 48 : index
    %c0_4 = arith.constant 0 : index
    %11 = vector.load %arg2[%c48, %c0_4] : memref<64x8xf32, #tpu.memory_space<vmem>>, vector<16x8xf32>
    tpu.vector_store %arg2[%c48, %c0_4], %9 {strides = array<i32>} : memref<64x8xf32, #tpu.memory_space<vmem>>, vector<16x8xf32>,
    %c16 = arith.constant 16 : index
    %c0_5 = arith.constant 0 : index
    %12 = vector.load %arg2[%c16, %c0_5] : memref<64x8xf32, #tpu.memory_space<vmem>>, vector<32x8xf32>
    tpu.vector_store %arg2[%c16, %c0_5], %8 {strides = array<i32>} : memref<64x8xf32, #tpu.memory_space<vmem>>, vector<32x8xf32>,
    return
  }
  func.func @transform_0(%arg0: i32) -> (i32, i32) {
    %c0_i32 = arith.constant 0 : i32
    %c0_i32_0 = arith.constant 0 : i32
    return %arg0, %c0_i32 : i32, i32
  }
  func.func @transform_1(%arg0: i32) -> (i32, i32) {
    %c0_i32 = arith.constant 0 : i32
    %c0_i32_0 = arith.constant 0 : i32
    return %arg0, %c0_i32 : i32, i32
  }
}

</mosaic_0001>

<llo_original>
// kernel: tpu_custom_call.1
$region0: #{tpu_custom_call.1}
  #allocation0 [shape = 'u32[]', space=smem, size = 0x4, offset = 0x4, fixed_abs, tag = 'smem constant byte address 0x4 - core index']
  #allocation1 [shape = 'u32[144,128]{1,0:T(1,128)}', space=vmem, size = 0x12000, scoped, tag = 'internal scratch']
  %s0 = inlined_call_operand.vmem [shape: f32[128,16], index: 0, kind: input, shape index: {}]
  %s1 = inlined_call_operand.vmem [shape: f32[128,8], index: 1, kind: output, shape index: {}]
  %s2 = sld [smem:[#allocation0]]
  $region37: #{tpu_custom_call.1} parent=0
    _
  %s4 = ssub.s32 1, %s2
  %s5 = scalar_select 0, %s4, %s2
  loop: start=0, step=1, limit=4
  $region2: #{tpu_custom_call.1} parent=0 // loop_pre_header
    _
  $region3: #{tpu_custom_call.1} parent=0 // loop_header
    %s7 = sphi 0, %s11
    %p8 = scmp.ge.s32.totalorder %s7, 4
    %s17 = sphi 0, %s19
    %s20 = sphi 0, %s17
    %s21 = sphi 0, %s20
    %s37 = sphi 0, %s21
    %s43 = sphi 0, %s45
    %s46 = sphi 0, %s43
    %s47 = sphi 0, %s46
    %s63 = sphi 0, %s47
  $region4: #{tpu_custom_call.1} parent=0 // loop_header_branch
    %10 = sbr.rel (%p8) target = $region8
  $region5: #{tpu_custom_call.1} parent=0 // loop_body
    %s12 = ssub.s32 %s7, 1
    %s13 = ssub.s32 %s7, 2
    %s14 = sadd.s32 %s7, 1
    %s15 = ssub.s32 %s7, %s14
    %p16 = scmp.eq.s32.totalorder %s15, 0
    %s18 = sadd.s32 %s17, 1
    %s19 = scalar_select %p16, %s17, %s18
    %p22 = pneg %p16
    %p23 = scmp.eq.s32.totalorder %s7, 1
    %p24 = por %p22, %p23
    %p25 = scmp.ne.s32.totalorder %s17, %s20
    %p26 = scmp.eq.s32.totalorder %s7, 0
    %p27 = por %p25, %p26
    %p28 = scmp.ne.s32.totalorder %s17, %s20
    %p29 = scmp.eq.s32.totalorder %s12, 1
    %p30 = por %p28, %p29
    %p31 = scmp.ne.s32.totalorder %s20, %s21
    %p32 = scmp.eq.s32.totalorder %s12, 0
    %p33 = por %p31, %p32
    %p34 = scmp.ne.s32.totalorder %s20, %s21
    %p35 = scmp.eq.s32.totalorder %s13, 1
    %p36 = por %p34, %p35
    %p38 = scmp.ne.s32.totalorder %s21, %s37
    %p39 = scmp.eq.s32.totalorder %s13, 0
    %p40 = por %p38, %p39
    %s41 = ssub.s32 %s7, %s14
    %p42 = scmp.eq.s32.totalorder %s41, 0
    %s44 = sadd.s32 %s43, 1
    %s45 = scalar_select %p42, %s43, %s44
    %p48 = pneg %p42
    %p49 = scmp.eq.s32.totalorder %s7, 1
    %p50 = por %p48, %p49
    %p51 = scmp.ne.s32.totalorder %s43, %s46
    %p52 = scmp.eq.s32.totalorder %s7, 0
    %p53 = por %p51, %p52
    %p54 = scmp.ne.s32.totalorder %s43, %s46
    %p55 = scmp.eq.s32.totalorder %s12, 1
    %p56 = por %p54, %p55
    %p57 = scmp.ne.s32.totalorder %s46, %s47
    %p58 = scmp.eq.s32.totalorder %s12, 0
    %p59 = por %p57, %p58
    %p60 = scmp.ne.s32.totalorder %s46, %s47
    %p61 = scmp.eq.s32.totalorder %s13, 1
    %p62 = por %p60, %p61
    %p64 = scmp.ne.s32.totalorder %s47, %s63
    %p65 = scmp.eq.s32.totalorder %s13, 0
    %p66 = por %p64, %p65
    %p67 = scmp.le.s32.totalorder 1, %s7
    %p68 = scmp.lt.s32.totalorder %s7, 3
    %p69 = pnand %p67, %p68
    %p70 = pneg %p69
    // Predicated region
    $region9: #{tpu_custom_call.1} parent=5 // pred_check
      _
    $region10: #{tpu_custom_call.1} parent=5 // pred_check_branch
      %72 = sbr.rel (%p69) target = $region12
    $region11: #{tpu_custom_call.1} parent=5 // pred_region
      %s73 = ssub.s32 %s7, 1
    $region12: #{tpu_custom_call.1} parent=5 // pred_fallthru
      _
    %p74 = scmp.lt.s32.totalorder %s7, 2
    // Predicated region
    $region13: #{tpu_custom_call.1} parent=5 // pred_check
      %p75 = pneg %p74
    $region14: #{tpu_custom_call.1} parent=5 // pred_check_branch
      %77 = sbr.rel (%p75) target = $region16
    $region15: #{tpu_custom_call.1} parent=5 // pred_region
      // Predicated region
      $region17: #{tpu_custom_call.1} parent=15 // pred_check
        %p78 = pneg %p27
      $region18: #{tpu_custom_call.1} parent=15 // pred_check_branch
        %80 = sbr.rel (%p78) target = $region20
      $region19: #{tpu_custom_call.1} parent=15 // pred_region
        %s81 = smul.u32 8, %s7
        %p82 = scmp.lt.s32.totalorder %s81, 15
        %s83 = scalar_select %p82, %s81, 15
        %s84 = smul.addr %s83, 8
        %s85 = scalar_lea.vmem %s0, %s84
        %s86 = smul.u32 8, %s7
      $region20: #{tpu_custom_call.1} parent=15 // pred_fallthru
        _
    $region16: #{tpu_custom_call.1} parent=5 // pred_fallthru
      _
    %p87 = scmp.le.s32.totalorder 1, %s7
    %p88 = scmp.lt.s32.totalorder %s7, 3
    %p89 = pnand %p87, %p88
    %p90 = pneg %p89
    // Predicated region
    $region21: #{tpu_custom_call.1} parent=5 // pred_check
      _
    $region22: #{tpu_custom_call.1} parent=5 // pred_check_branch
      %92 = sbr.rel (%p89) target = $region24
    $region23: #{tpu_custom_call.1} parent=5 // pred_region
      %s93 = ssub.s32 %s7, 1
      %s94 = smul.u32 8, %s12
      %p95 = scmp.lt.s32.totalorder %s94, 15
      %s96 = scalar_select %p95, %s94, 15
      %s97 = smul.addr %s96, 8
      %s98 = scalar_lea.vmem %s0, %s97
      %p99 = pneg %p33
      %p100 = pneg %p30
      %p101 = pneg %p59
      %p102 = pneg %p56
      %s103 = smul.u32 8, %s12
      %p104 = scmp.lt.s32.totalorder %s103, 15
      %s105 = scalar_select %p104, %s103, 15
      %s106 = smul.addr %s105, 8
      %s107 = scalar_lea.vmem %s1, %s106
      %s108 = smul.u32 8, %s12
      %p109 = scmp.lt.s32.totalorder %s108, 15
      %s110 = scalar_select %p109, %s108, 15
      %s111 = smul.addr %s110, 8
      %s112 = scalar_lea.vmem %s0, %s111
      %s113 = smul.u32 8, %s12
      %s114 = smul.u32 8, %s12
      %p115 = scmp.lt.s32.totalorder %s114, 15
      %s116 = scalar_select %p115, %s114, 15
      %s117 = smul.addr %s116, 8
      %s118 = scalar_lea.vmem %s1, %s117
      %s119 = smul.u32 8, %s12
      %v120 = vld [vmem:[%s112] ss:$2 sm:$0xff]
      %s121 = scalar_lea.vmem %s112, 16
      %v122 = vld [vmem:[%s121] ss:$2 sm:$0xff]
      %s123 = scalar_lea.vmem %s112, 32
      %v124 = vld [vmem:[%s123] ss:$2 sm:$0xff]
      %s125 = scalar_lea.vmem %s112, 48
      %v126 = vld [vmem:[%s125] ss:$2 sm:$0xff]
      %v127 = vlaneseq
      %v128 = vshrl.u32 %v127, 7
      %v129 = vadd.s32 %v128, 8
      %v130 = vlaneseq
      %v131 = vand.u32 %v130, 127
      %v132 = vmul.u32 %v131, 2
      %vm133 = vcmp.eq.s32.totalorder %v128, %v132
      %vm134 = vcmp.eq.s32.totalorder %v129, %v132
      %v135 = vsel %vm133, 1, 0
      %v136 = vsel %vm134, 1, 0
      %v137 = vcvt.s32.f32 %v135
      %v138 = vcvt.s32.f32 %v136
      %vm139 = vcmask 130048
      %v141 = vsel %vm139, %v120, 0
      %v144 = vsel %vm139, %v122, 0
      %v147 = vsel %vm139, %v124, 0
      %v150 = vsel %vm139, %v126, 0
      %152 = vmatprep.subr.mxu0 0.0
      %153 = vmatpush1.msra.mxu0 0.0
      %154 = vmatprep.subr.mxu0 0.0
      %155 = vmatpush1.msra.mxu0 0.0
      %156 = vmatprep.subr.mxu0 0.0
      %157 = vmatpush1.msra.mxu0 0.0
      %158 = vmatprep.subr.mxu0 0.0
      %159 = vmatpush1.msra.mxu0 0.0
      %160 = vmatprep.subr.mxu0 0.0
      %161 = vmatpush1.msra.mxu0 0.0
      %162 = vmatprep.subr.mxu0 0.0
      %163 = vmatpush1.msra.mxu0 0.0
      %164 = vmatprep.subr.mxu0 0.0
      %165 = vmatpush1.msra.mxu0 0.0
      %166 = vmatprep.subr.mxu0 0.0
      %167 = vmatpush1.msra.mxu0 0.0
      %168 = vmatprep.subr.mxu0 0.0
      %169 = vmatpush1.msra.mxu0 0.0
      %170 = vmatprep.subr.mxu0 0.0
      %171 = vmatpush1.msra.mxu0 0.0
      %172 = vmatprep.subr.mxu0 0.0
      %173 = vmatpush1.msra.mxu0 0.0
      %174 = vmatprep.subr.mxu0 0.0
      %175 = vmatpush1.msra.mxu0 0.0
      %176 = vmatprep.subr.mxu0 0.0
      %177 = vmatpush1.msra.mxu0 0.0
      %178 = vmatprep.subr.mxu0 0.0
      %179 = vmatpush1.msra.mxu0 0.0
      %180 = vmatprep.subr.mxu0 0.0
      %v181 = vand.u32 %v138, 4294901760
      %182 = vmatpush1.msra.mxu0 %v181
      %183 = vmatprep.subr.mxu0 0.0
      %v184 = vand.u32 %v137, 4294901760
      %185 = vmatpush1.msra.mxu0 %v184
      %186 = vmatprep.subr.mxu0 0.0
      %187 = vmatpush2.msra.mxu0 0.0
      %188 = vmatprep.subr.mxu0 0.0
      %189 = vmatpush2.msra.mxu0 0.0
      %190 = vmatprep.subr.mxu0 0.0
      %191 = vmatpush2.msra.mxu0 0.0
      %192 = vmatprep.subr.mxu0 0.0
      %193 = vmatpush2.msra.mxu0 0.0
      %194 = vmatprep.subr.mxu0 0.0
      %195 = vmatpush2.msra.mxu0 0.0
      %196 = vmatprep.subr.mxu0 0.0
      %197 = vmatpush2.msra.mxu0 0.0
      %198 = vmatprep.subr.mxu0 0.0
      %199 = vmatpush2.msra.mxu0 0.0
      %200 = vmatprep.subr.mxu0 0.0
      %201 = vmatpush2.msra.mxu0 0.0
      %202 = vmatprep.subr.mxu0 0.0
      %203 = vmatpush2.msra.mxu0 0.0
      %204 = vmatprep.subr.mxu0 0.0
      %205 = vmatpush2.msra.mxu0 0.0
      %206 = vmatprep.subr.mxu0 0.0
      %207 = vmatpush2.msra.mxu0 0.0
      %208 = vmatprep.subr.mxu0 0.0
      %209 = vmatpush2.msra.mxu0 0.0
      %210 = vmatprep.subr.mxu0 0.0
      %211 = vmatpush2.msra.mxu0 0.0
      %212 = vmatprep.subr.mxu0 0.0
      %213 = vmatpush2.msra.mxu0 0.0
      %214 = vmatprep.subr.mxu0 0.0
      %215 = vmatpush2.msra.mxu0 0.0
      %216 = vmatprep.subr.mxu0 0.0
      %217 = vmatpush2.msra.mxu0 0.0
      %218 = vmatprep.mubr.f32.mxu0 0.0
      %v219 = vand.u32 %v141, 4294901760
      %v220 = vsub.f32 %v141, %v219
      %v221 = vand.u32 %v220, 4294901760
      %v222 = vsub.f32 %v220, %v221
      %v223 = vand.u32 %v222, 4294901760
      %224 = vmatmul.mubr.f32.gmra.mxu0 %v223
      %v225 = vpop.f32.mrf.mxu0
      %v226 = vadd.f32 0.0, %v225
      %v227 = vpop.f32.mrf.mxu0
      %228 = vmatprep.mubr.f32.mxu0 0.0
      %v229 = vand.u32 %v144, 4294901760
      %v230 = vsub.f32 %v144, %v229
      %v231 = vand.u32 %v230, 4294901760
      %v232 = vsub.f32 %v230, %v231
      %v233 = vand.u32 %v232, 4294901760
      %234 = vmatmul.mubr.f32.gmra.mxu0 %v233
      %v235 = vpop.f32.mrf.mxu0
      %v236 = vadd.f32 0.0, %v235
      %v237 = vpop.f32.mrf.mxu0
      %238 = vmatprep.mubr.f32.mxu0 0.0
      %v239 = vand.u32 %v147, 4294901760
      %v240 = vsub.f32 %v147, %v239
      %v241 = vand.u32 %v240, 4294901760
      %v242 = vsub.f32 %v240, %v241
      %v243 = vand.u32 %v242, 4294901760
      %244 = vmatmul.mubr.f32.gmra.mxu0 %v243
      %v245 = vpop.f32.mrf.mxu0
      %v246 = vadd.f32 0.0, %v245
      %v247 = vpop.f32.mrf.mxu0
      %248 = vmatprep.mubr.f32.mxu0 0.0
      %v249 = vand.u32 %v150, 4294901760
      %v250 = vsub.f32 %v150, %v249
      %v251 = vand.u32 %v250, 4294901760
      %v252 = vsub.f32 %v250, %v251
      %v253 = vand.u32 %v252, 4294901760
      %254 = vmatmul.mubr.f32.gmra.mxu0 %v253
      %v255 = vpop.f32.mrf.mxu0
      %v256 = vadd.f32 0.0, %v255
      %v257 = vpop.f32.mrf.mxu0
      %258 = vdwg.mxu0
      %259 = vmatprep.subr.mxu0 0.0
      %260 = vmatpush1.msra.mxu0 0.0
      %261 = vmatprep.subr.mxu0 0.0
      %262 = vmatpush1.msra.mxu0 0.0
      %263 = vmatprep.subr.mxu0 0.0
      %264 = vmatpush1.msra.mxu0 0.0
      %265 = vmatprep.subr.mxu0 0.0
      %266 = vmatpush1.msra.mxu0 0.0
      %267 = vmatprep.subr.mxu0 0.0
      %268 = vmatpush1.msra.mxu0 0.0
      %269 = vmatprep.subr.mxu0 0.0
      %270 = vmatpush1.msra.mxu0 0.0
      %271 = vmatprep.subr.mxu0 0.0
      %272 = vmatpush1.msra.mxu0 0.0
      %273 = vmatprep.subr.mxu0 0.0
      %274 = vmatpush1.msra.mxu0 0.0
      %275 = vmatprep.subr.mxu0 0.0
      %276 = vmatpush1.msra.mxu0 0.0
      %277 = vmatprep.subr.mxu0 0.0
      %278 = vmatpush1.msra.mxu0 0.0
      %279 = vmatprep.subr.mxu0 0.0
      %280 = vmatpush1.msra.mxu0 0.0
      %281 = vmatprep.subr.mxu0 0.0
      %282 = vmatpush1.msra.mxu0 0.0
      %283 = vmatprep.subr.mxu0 0.0
      %284 = vmatpush1.msra.mxu0 0.0
      %285 = vmatprep.subr.mxu0 0.0
      %286 = vmatpush1.msra.mxu0 0.0
      %287 = vmatprep.subr.mxu0 0.0
      %v288 = vand.u32 %v138, 4294901760
      %v289 = vsub.f32 %v138, %v288
      %v290 = vand.u32 %v289, 4294901760
      %v291 = vsub.f32 %v289, %v290
      %v292 = vand.u32 %v291, 4294901760
      %293 = vmatpush1.msra.mxu0 %v292
      %294 = vmatprep.subr.mxu0 0.0
      %v295 = vand.u32 %v137, 4294901760
      %v296 = vsub.f32 %v137, %v295
      %v297 = vand.u32 %v296, 4294901760
      %v298 = vsub.f32 %v296, %v297
      %v299 = vand.u32 %v298, 4294901760
      %300 = vmatpush1.msra.mxu0 %v299
      %301 = vmatprep.subr.mxu0 0.0
      %302 = vmatpush2.msra.mxu0 0.0
      %303 = vmatprep.subr.mxu0 0.0
      %304 = vmatpush2.msra.mxu0 0.0
      %305 = vmatprep.subr.mxu0 0.0
      %306 = vmatpush2.msra.mxu0 0.0
      %307 = vmatprep.subr.mxu0 0.0
      %308 = vmatpush2.msra.mxu0 0.0
      %309 = vmatprep.subr.mxu0 0.0
      %310 = vmatpush2.msra.mxu0 0.0
      %311 = vmatprep.subr.mxu0 0.0
      %312 = vmatpush2.msra.mxu0 0.0
      %313 = vmatprep.subr.mxu0 0.0
      %314 = vmatpush2.msra.mxu0 0.0
      %315 = vmatprep.subr.mxu0 0.0
      %316 = vmatpush2.msra.mxu0 0.0
      %317 = vmatprep.subr.mxu0 0.0
      %318 = vmatpush2.msra.mxu0 0.0
      %319 = vmatprep.subr.mxu0 0.0
      %320 = vmatpush2.msra.mxu0 0.0
      %321 = vmatprep.subr.mxu0 0.0
      %322 = vmatpush2.msra.mxu0 0.0
      %323 = vmatprep.subr.mxu0 0.0
      %324 = vmatpush2.msra.mxu0 0.0
      %325 = vmatprep.subr.mxu0 0.0
      %326 = vmatpush2.msra.mxu0 0.0
      %327 = vmatprep.subr.mxu0 0.0
      %328 = vmatpush2.msra.mxu0 0.0
      %329 = vmatprep.subr.mxu0 0.0
      %330 = vmatpush2.msra.mxu0 0.0
      %331 = vmatprep.subr.mxu0 0.0
      %332 = vmatpush2.msra.mxu0 0.0
      %333 = vmatprep.mubr.f32.mxu0 0.0
      %v334 = vand.u32 %v141, 4294901760
      %335 = vmatmul.mubr.f32.gmra.mxu0 %v334
      %v336 = vpop.f32.mrf.mxu0
      %v337 = vadd.f32 %v226, %v336
      %v338 = vpop.f32.mrf.mxu0
      %339 = vmatprep.mubr.f32.mxu0 0.0
      %v340 = vand.u32 %v144, 4294901760
      %341 = vmatmul.mubr.f32.gmra.mxu0 %v340
      %v342 = vpop.f32.mrf.mxu0
      %v343 = vadd.f32 %v236, %v342
      %v344 = vpop.f32.mrf.mxu0
      %345 = vmatprep.mubr.f32.mxu0 0.0
      %v346 = vand.u32 %v147, 4294901760
      %347 = vmatmul.mubr.f32.gmra.mxu0 %v346
      %v348 = vpop.f32.mrf.mxu0
      %v349 = vadd.f32 %v246, %v348
      %v350 = vpop.f32.mrf.mxu0
      %351 = vmatprep.mubr.f32.mxu0 0.0
      %v352 = vand.u32 %v150, 4294901760
      %353 = vmatmul.mubr.f32.gmra.mxu0 %v352
      %v354 = vpop.f32.mrf.mxu0
      %v355 = vadd.f32 %v256, %v354
      %v356 = vpop.f32.mrf.mxu0
      %357 = vdwg.mxu0
      %358 = vmatprep.subr.mxu0 0.0
      %359 = vmatpush1.msra.mxu0 0.0
      %360 = vmatprep.subr.mxu0 0.0
      %361 = vmatpush1.msra.mxu0 0.0
      %362 = vmatprep.subr.mxu0 0.0
      %363 = vmatpush1.msra.mxu0 0.0
      %364 = vmatprep.subr.mxu0 0.0
      %365 = vmatpush1.msra.mxu0 0.0
      %366 = vmatprep.subr.mxu0 0.0
      %367 = vmatpush1.msra.mxu0 0.0
      %368 = vmatprep.subr.mxu0 0.0
      %369 = vmatpush1.msra.mxu0 0.0
      %370 = vmatprep.subr.mxu0 0.0
      %371 = vmatpush1.msra.mxu0 0.0
      %372 = vmatprep.subr.mxu0 0.0
      %373 = vmatpush1.msra.mxu0 0.0
      %374 = vmatprep.subr.mxu0 0.0
      %375 = vmatpush1.msra.mxu0 0.0
      %376 = vmatprep.subr.mxu0 0.0
      %377 = vmatpush1.msra.mxu0 0.0
      %378 = vmatprep.subr.mxu0 0.0
      %379 = vmatpush1.msra.mxu0 0.0
      %380 = vmatprep.subr.mxu0 0.0
      %381 = vmatpush1.msra.mxu0 0.0
      %382 = vmatprep.subr.mxu0 0.0
      %383 = vmatpush1.msra.mxu0 0.0
      %384 = vmatprep.subr.mxu0 0.0
      %385 = vmatpush1.msra.mxu0 0.0
      %386 = vmatprep.subr.mxu0 0.0
      %v387 = vand.u32 %v138, 4294901760
      %v388 = vsub.f32 %v138, %v387
      %389 = vmatpush1.msra.mxu0 %v388
      %390 = vmatprep.subr.mxu0 0.0
      %v391 = vand.u32 %v137, 4294901760
      %v392 = vsub.f32 %v137, %v391
      %393 = vmatpush1.msra.mxu0 %v392
      %394 = vmatprep.subr.mxu0 0.0
      %395 = vmatpush2.msra.mxu0 0.0
      %396 = vmatprep.subr.mxu0 0.0
      %397 = vmatpush2.msra.mxu0 0.0
      %398 = vmatprep.subr.mxu0 0.0
      %399 = vmatpush2.msra.mxu0 0.0
      %400 = vmatprep.subr.mxu0 0.0
      %401 = vmatpush2.msra.mxu0 0.0
      %402 = vmatprep.subr.mxu0 0.0
      %403 = vmatpush2.msra.mxu0 0.0
      %404 = vmatprep.subr.mxu0 0.0
      %405 = vmatpush2.msra.mxu0 0.0
      %406 = vmatprep.subr.mxu0 0.0
      %407 = vmatpush2.msra.mxu0 0.0
      %408 = vmatprep.subr.mxu0 0.0
      %409 = vmatpush2.msra.mxu0 0.0
      %410 = vmatprep.subr.mxu0 0.0
      %411 = vmatpush2.msra.mxu0 0.0
      %412 = vmatprep.subr.mxu0 0.0
      %413 = vmatpush2.msra.mxu0 0.0
      %414 = vmatprep.subr.mxu0 0.0
      %415 = vmatpush2.msra.mxu0 0.0
      %416 = vmatprep.subr.mxu0 0.0
      %417 = vmatpush2.msra.mxu0 0.0
      %418 = vmatprep.subr.mxu0 0.0
      %419 = vmatpush2.msra.mxu0 0.0
      %420 = vmatprep.subr.mxu0 0.0
      %421 = vmatpush2.msra.mxu0 0.0
      %422 = vmatprep.subr.mxu0 0.0
      %423 = vmatpush2.msra.mxu0 0.0
      %424 = vmatprep.subr.mxu0 0.0
      %425 = vmatpush2.msra.mxu0 0.0
      %426 = vmatprep.mubr.f32.mxu0 0.0
      %v427 = vand.u32 %v141, 4294901760
      %v428 = vsub.f32 %v141, %v427
      %429 = vmatmul.mubr.f32.gmra.mxu0 %v428
      %v430 = vpop.f32.mrf.mxu0
      %v431 = vadd.f32 %v337, %v430
      %v432 = vpop.f32.mrf.mxu0
      %433 = vmatprep.mubr.f32.mxu0 0.0
      %v434 = vand.u32 %v144, 4294901760
      %v435 = vsub.f32 %v144, %v434
      %436 = vmatmul.mubr.f32.gmra.mxu0 %v435
      %v437 = vpop.f32.mrf.mxu0
      %v438 = vadd.f32 %v343, %v437
      %v439 = vpop.f32.mrf.mxu0
      %440 = vmatprep.mubr.f32.mxu0 0.0
      %v441 = vand.u32 %v147, 4294901760
      %v442 = vsub.f32 %v147, %v441
      %443 = vmatmul.mubr.f32.gmra.mxu0 %v442
      %v444 = vpop.f32.mrf.mxu0
      %v445 = vadd.f32 %v349, %v444
      %v446 = vpop.f32.mrf.mxu0
      %447 = vmatprep.mubr.f32.mxu0 0.0
      %v448 = vand.u32 %v150, 4294901760
      %v449 = vsub.f32 %v150, %v448
      %450 = vmatmul.mubr.f32.gmra.mxu0 %v449
      %v451 = vpop.f32.mrf.mxu0
      %v452 = vadd.f32 %v355, %v451
      %v453 = vpop.f32.mrf.mxu0
      %454 = vdwg.mxu0
      %455 = vmatprep.subr.mxu0 0.0
      %456 = vmatpush1.msra.mxu0 0.0
      %457 = vmatprep.subr.mxu0 0.0
      %458 = vmatpush1.msra.mxu0 0.0
      %459 = vmatprep.subr.mxu0 0.0
      %460 = vmatpush1.msra.mxu0 0.0
      %461 = vmatprep.subr.mxu0 0.0
      %462 = vmatpush1.msra.mxu0 0.0
      %463 = vmatprep.subr.mxu0 0.0
      %464 = vmatpush1.msra.mxu0 0.0
      %465 = vmatprep.subr.mxu0 0.0
      %466 = vmatpush1.msra.mxu0 0.0
      %467 = vmatprep.subr.mxu0 0.0
      %468 = vmatpush1.msra.mxu0 0.0
      %469 = vmatprep.subr.mxu0 0.0
      %470 = vmatpush1.msra.mxu0 0.0
      %471 = vmatprep.subr.mxu0 0.0
      %472 = vmatpush1.msra.mxu0 0.0
      %473 = vmatprep.subr.mxu0 0.0
      %474 = vmatpush1.msra.mxu0 0.0
      %475 = vmatprep.subr.mxu0 0.0
      %476 = vmatpush1.msra.mxu0 0.0
      %477 = vmatprep.subr.mxu0 0.0
      %478 = vmatpush1.msra.mxu0 0.0
      %479 = vmatprep.subr.mxu0 0.0
      %480 = vmatpush1.msra.mxu0 0.0
      %481 = vmatprep.subr.mxu0 0.0
      %482 = vmatpush1.msra.mxu0 0.0
      %483 = vmatprep.subr.mxu0 0.0
      %v484 = vand.u32 %v138, 4294901760
      %485 = vmatpush1.msra.mxu0 %v484
      %486 = vmatprep.subr.mxu0 0.0
      %v487 = vand.u32 %v137, 4294901760
      %488 = vmatpush1.msra.mxu0 %v487
      %489 = vmatprep.subr.mxu0 0.0
      %490 = vmatpush2.msra.mxu0 0.0
      %491 = vmatprep.subr.mxu0 0.0
      %492 = vmatpush2.msra.mxu0 0.0
      %493 = vmatprep.subr.mxu0 0.0
      %494 = vmatpush2.msra.mxu0 0.0
      %495 = vmatprep.subr.mxu0 0.0
      %496 = vmatpush2.msra.mxu0 0.0
      %497 = vmatprep.subr.mxu0 0.0
      %498 = vmatpush2.msra.mxu0 0.0
      %499 = vmatprep.subr.mxu0 0.0
      %500 = vmatpush2.msra.mxu0 0.0
      %501 = vmatprep.subr.mxu0 0.0
      %502 = vmatpush2.msra.mxu0 0.0
      %503 = vmatprep.subr.mxu0 0.0
      %504 = vmatpush2.msra.mxu0 0.0
      %505 = vmatprep.subr.mxu0 0.0
      %506 = vmatpush2.msra.mxu0 0.0
      %507 = vmatprep.subr.mxu0 0.0
      %508 = vmatpush2.msra.mxu0 0.0
      %509 = vmatprep.subr.mxu0 0.0
      %510 = vmatpush2.msra.mxu0 0.0
      %511 = vmatprep.subr.mxu0 0.0
      %512 = vmatpush2.msra.mxu0 0.0
      %513 = vmatprep.subr.mxu0 0.0
      %514 = vmatpush2.msra.mxu0 0.0
      %515 = vmatprep.subr.mxu0 0.0
      %516 = vmatpush2.msra.mxu0 0.0
      %517 = vmatprep.subr.mxu0 0.0
      %518 = vmatpush2.msra.mxu0 0.0
      %519 = vmatprep.subr.mxu0 0.0
      %520 = vmatpush2.msra.mxu0 0.0
      %521 = vmatprep.mubr.f32.mxu0 0.0
      %v522 = vand.u32 %v141, 4294901760
      %v523 = vsub.f32 %v141, %v522
      %v524 = vand.u32 %v523, 4294901760
      %525 = vmatmul.mubr.f32.gmra.mxu0 %v524
      %v526 = vpop.f32.mrf.mxu0
      %v527 = vadd.f32 %v431, %v526
      %v528 = vpop.f32.mrf.mxu0
      %529 = vmatprep.mubr.f32.mxu0 0.0
      %v530 = vand.u32 %v144, 4294901760
      %v531 = vsub.f32 %v144, %v530
      %v532 = vand.u32 %v531, 4294901760
      %533 = vmatmul.mubr.f32.gmra.mxu0 %v532
      %v534 = vpop.f32.mrf.mxu0
      %v535 = vadd.f32 %v438, %v534
      %v536 = vpop.f32.mrf.mxu0
      %537 = vmatprep.mubr.f32.mxu0 0.0
      %v538 = vand.u32 %v147, 4294901760
      %v539 = vsub.f32 %v147, %v538
      %v540 = vand.u32 %v539, 4294901760
      %541 = vmatmul.mubr.f32.gmra.mxu0 %v540
      %v542 = vpop.f32.mrf.mxu0
      %v543 = vadd.f32 %v445, %v542
      %v544 = vpop.f32.mrf.mxu0
      %545 = vmatprep.mubr.f32.mxu0 0.0
      %v546 = vand.u32 %v150, 4294901760
      %v547 = vsub.f32 %v150, %v546
      %v548 = vand.u32 %v547, 4294901760
      %549 = vmatmul.mubr.f32.gmra.mxu0 %v548
      %v550 = vpop.f32.mrf.mxu0
      %v551 = vadd.f32 %v452, %v550
      %v552 = vpop.f32.mrf.mxu0
      %553 = vdwg.mxu0
      %554 = vmatprep.subr.mxu0 0.0
      %555 = vmatpush1.msra.mxu0 0.0
      %556 = vmatprep.subr.mxu0 0.0
      %557 = vmatpush1.msra.mxu0 0.0
      %558 = vmatprep.subr.mxu0 0.0
      %559 = vmatpush1.msra.mxu0 0.0
      %560 = vmatprep.subr.mxu0 0.0
      %561 = vmatpush1.msra.mxu0 0.0
      %562 = vmatprep.subr.mxu0 0.0
      %563 = vmatpush1.msra.mxu0 0.0
      %564 = vmatprep.subr.mxu0 0.0
      %565 = vmatpush1.msra.mxu0 0.0
      %566 = vmatprep.subr.mxu0 0.0
      %567 = vmatpush1.msra.mxu0 0.0
      %568 = vmatprep.subr.mxu0 0.0
      %569 = vmatpush1.msra.mxu0 0.0
      %570 = vmatprep.subr.mxu0 0.0
      %571 = vmatpush1.msra.mxu0 0.0
      %572 = vmatprep.subr.mxu0 0.0
      %573 = vmatpush1.msra.mxu0 0.0
      %574 = vmatprep.subr.mxu0 0.0
      %575 = vmatpush1.msra.mxu0 0.0
      %576 = vmatprep.subr.mxu0 0.0
      %577 = vmatpush1.msra.mxu0 0.0
      %578 = vmatprep.subr.mxu0 0.0
      %579 = vmatpush1.msra.mxu0 0.0
      %580 = vmatprep.subr.mxu0 0.0
      %581 = vmatpush1.msra.mxu0 0.0
      %582 = vmatprep.subr.mxu0 0.0
      %v583 = vand.u32 %v138, 4294901760
      %v584 = vsub.f32 %v138, %v583
      %v585 = vand.u32 %v584, 4294901760
      %586 = vmatpush1.msra.mxu0 %v585
      %587 = vmatprep.subr.mxu0 0.0
      %v588 = vand.u32 %v137, 4294901760
      %v589 = vsub.f32 %v137, %v588
      %v590 = vand.u32 %v589, 4294901760
      %591 = vmatpush1.msra.mxu0 %v590
      %592 = vmatprep.subr.mxu0 0.0
      %593 = vmatpush2.msra.mxu0 0.0
      %594 = vmatprep.subr.mxu0 0.0
      %595 = vmatpush2.msra.mxu0 0.0
      %596 = vmatprep.subr.mxu0 0.0
      %597 = vmatpush2.msra.mxu0 0.0
      %598 = vmatprep.subr.mxu0 0.0
      %599 = vmatpush2.msra.mxu0 0.0
      %600 = vmatprep.subr.mxu0 0.0
      %601 = vmatpush2.msra.mxu0 0.0
      %602 = vmatprep.subr.mxu0 0.0
      %603 = vmatpush2.msra.mxu0 0.0
      %604 = vmatprep.subr.mxu0 0.0
      %605 = vmatpush2.msra.mxu0 0.0
      %606 = vmatprep.subr.mxu0 0.0
      %607 = vmatpush2.msra.mxu0 0.0
      %608 = vmatprep.subr.mxu0 0.0
      %609 = vmatpush2.msra.mxu0 0.0
      %610 = vmatprep.subr.mxu0 0.0
      %611 = vmatpush2.msra.mxu0 0.0
      %612 = vmatprep.subr.mxu0 0.0
      %613 = vmatpush2.msra.mxu0 0.0
      %614 = vmatprep.subr.mxu0 0.0
      %615 = vmatpush2.msra.mxu0 0.0
      %616 = vmatprep.subr.mxu0 0.0
      %617 = vmatpush2.msra.mxu0 0.0
      %618 = vmatprep.subr.mxu0 0.0
      %619 = vmatpush2.msra.mxu0 0.0
      %620 = vmatprep.subr.mxu0 0.0
      %621 = vmatpush2.msra.mxu0 0.0
      %622 = vmatprep.subr.mxu0 0.0
      %623 = vmatpush2.msra.mxu0 0.0
      %624 = vmatprep.mubr.f32.mxu0 0.0
      %v625 = vand.u32 %v141, 4294901760
      %626 = vmatmul.mubr.f32.gmra.mxu0 %v625
      %v627 = vpop.f32.mrf.mxu0
      %v628 = vadd.f32 %v527, %v627
      %v629 = vpop.f32.mrf.mxu0
      %630 = vmatprep.mubr.f32.mxu0 0.0
      %v631 = vand.u32 %v144, 4294901760
      %632 = vmatmul.mubr.f32.gmra.mxu0 %v631
      %v633 = vpop.f32.mrf.mxu0
      %v634 = vadd.f32 %v535, %v633
      %v635 = vpop.f32.mrf.mxu0
      %636 = vmatprep.mubr.f32.mxu0 0.0
      %v637 = vand.u32 %v147, 4294901760
      %638 = vmatmul.mubr.f32.gmra.mxu0 %v637
      %v639 = vpop.f32.mrf.mxu0
      %v640 = vadd.f32 %v543, %v639
      %v641 = vpop.f32.mrf.mxu0
      %642 = vmatprep.mubr.f32.mxu0 0.0
      %v643 = vand.u32 %v150, 4294901760
      %644 = vmatmul.mubr.f32.gmra.mxu0 %v643
      %v645 = vpop.f32.mrf.mxu0
      %v646 = vadd.f32 %v551, %v645
      %v647 = vpop.f32.mrf.mxu0
      %648 = vdwg.mxu0
      %649 = vmatprep.subr.mxu0 0.0
      %650 = vmatpush1.msra.mxu0 0.0
      %651 = vmatprep.subr.mxu0 0.0
      %652 = vmatpush1.msra.mxu0 0.0
      %653 = vmatprep.subr.mxu0 0.0
      %654 = vmatpush1.msra.mxu0 0.0
      %655 = vmatprep.subr.mxu0 0.0
      %656 = vmatpush1.msra.mxu0 0.0
      %657 = vmatprep.subr.mxu0 0.0
      %658 = vmatpush1.msra.mxu0 0.0
      %659 = vmatprep.subr.mxu0 0.0
      %660 = vmatpush1.msra.mxu0 0.0
      %661 = vmatprep.subr.mxu0 0.0
      %662 = vmatpush1.msra.mxu0 0.0
      %663 = vmatprep.subr.mxu0 0.0
      %664 = vmatpush1.msra.mxu0 0.0
      %665 = vmatprep.subr.mxu0 0.0
      %666 = vmatpush1.msra.mxu0 0.0
      %667 = vmatprep.subr.mxu0 0.0
      %668 = vmatpush1.msra.mxu0 0.0
      %669 = vmatprep.subr.mxu0 0.0
      %670 = vmatpush1.msra.mxu0 0.0
      %671 = vmatprep.subr.mxu0 0.0
      %672 = vmatpush1.msra.mxu0 0.0
      %673 = vmatprep.subr.mxu0 0.0
      %674 = vmatpush1.msra.mxu0 0.0
      %675 = vmatprep.subr.mxu0 0.0
      %676 = vmatpush1.msra.mxu0 0.0
      %677 = vmatprep.subr.mxu0 0.0
      %v678 = vand.u32 %v138, 4294901760
      %679 = vmatpush1.msra.mxu0 %v678
      %680 = vmatprep.subr.mxu0 0.0
      %v681 = vand.u32 %v137, 4294901760
      %682 = vmatpush1.msra.mxu0 %v681
      %683 = vmatprep.subr.mxu0 0.0
      %684 = vmatpush2.msra.mxu0 0.0
      %685 = vmatprep.subr.mxu0 0.0
      %686 = vmatpush2.msra.mxu0 0.0
      %687 = vmatprep.subr.mxu0 0.0
      %688 = vmatpush2.msra.mxu0 0.0
      %689 = vmatprep.subr.mxu0 0.0
      %690 = vmatpush2.msra.mxu0 0.0
      %691 = vmatprep.subr.mxu0 0.0
      %692 = vmatpush2.msra.mxu0 0.0
      %693 = vmatprep.subr.mxu0 0.0
      %694 = vmatpush2.msra.mxu0 0.0
      %695 = vmatprep.subr.mxu0 0.0
      %696 = vmatpush2.msra.mxu0 0.0
      %697 = vmatprep.subr.mxu0 0.0
      %698 = vmatpush2.msra.mxu0 0.0
      %699 = vmatprep.subr.mxu0 0.0
      %700 = vmatpush2.msra.mxu0 0.0
      %701 = vmatprep.subr.mxu0 0.0
      %702 = vmatpush2.msra.mxu0 0.0
      %703 = vmatprep.subr.mxu0 0.0
      %704 = vmatpush2.msra.mxu0 0.0
      %705 = vmatprep.subr.mxu0 0.0
      %706 = vmatpush2.msra.mxu0 0.0
      %707 = vmatprep.subr.mxu0 0.0
      %708 = vmatpush2.msra.mxu0 0.0
      %709 = vmatprep.subr.mxu0 0.0
      %710 = vmatpush2.msra.mxu0 0.0
      %711 = vmatprep.subr.mxu0 0.0
      %712 = vmatpush2.msra.mxu0 0.0
      %713 = vmatprep.subr.mxu0 0.0
      %714 = vmatpush2.msra.mxu0 0.0
      %715 = vmatprep.mubr.f32.mxu0 0.0
      %v716 = vand.u32 %v141, 4294901760
      %717 = vmatmul.mubr.f32.gmra.mxu0 %v716
      %v718 = vpop.f32.mrf.mxu0
      %v719 = vadd.f32 %v628, %v718
      %v720 = vpop.f32.mrf.mxu0
      %721 = vmatprep.mubr.f32.mxu0 0.0
      %v722 = vand.u32 %v144, 4294901760
      %723 = vmatmul.mubr.f32.gmra.mxu0 %v722
      %v724 = vpop.f32.mrf.mxu0
      %v725 = vadd.f32 %v634, %v724
      %v726 = vpop.f32.mrf.mxu0
      %727 = vmatprep.mubr.f32.mxu0 0.0
      %v728 = vand.u32 %v147, 4294901760
      %729 = vmatmul.mubr.f32.gmra.mxu0 %v728
      %v730 = vpop.f32.mrf.mxu0
      %v731 = vadd.f32 %v640, %v730
      %v732 = vpop.f32.mrf.mxu0
      %733 = vmatprep.mubr.f32.mxu0 0.0
      %v734 = vand.u32 %v150, 4294901760
      %735 = vmatmul.mubr.f32.gmra.mxu0 %v734
      %v736 = vpop.f32.mrf.mxu0
      %v737 = vadd.f32 %v646, %v736
      %v738 = vpop.f32.mrf.mxu0
      %739 = vdwg.mxu0
      %vm740 = vcmask 64512
      %741 = vst.msk [vmem:[%s118] sm:$0xff] %vm740, 0.0
      %742 = vst.msk [vmem:[%s118 + $0x8] sm:$0xff] %vm740, 0.0
      %743 = vst.msk [vmem:[%s118 + $0x30] sm:$0xff] %vm740, 0.0
      %744 = vst.msk [vmem:[%s118 + $0x38] sm:$0xff] %vm740, 0.0
      %745 = vst.msk [vmem:[%s118 + $0x10] sm:$0xff] %vm740, %v719
      %746 = vst.msk [vmem:[%s118 + $0x18] sm:$0xff] %vm740, %v725
      %747 = vst.msk [vmem:[%s118 + $0x20] sm:$0xff] %vm740, %v731
      %748 = vst.msk [vmem:[%s118 + $0x28] sm:$0xff] %vm740, %v737
      %s749 = smul.u32 8, %s12
      %p750 = scmp.lt.s32.totalorder %s749, 15
      %s751 = scalar_select %p750, %s749, 15
      %s752 = smul.addr %s751, 8
      %s753 = scalar_lea.vmem %s1, %s752
      // Predicated region
      $region25: #{tpu_custom_call.1} parent=23 // pred_check
        %p754 = pneg %p56
      $region26: #{tpu_custom_call.1} parent=23 // pred_check_branch
        %756 = sbr.rel (%p754) target = $region28
      $region27: #{tpu_custom_call.1} parent=23 // pred_region
        %s757 = smul.u32 8, %s12
      $region28: #{tpu_custom_call.1} parent=23 // pred_fallthru
        _
    $region24: #{tpu_custom_call.1} parent=5 // pred_fallthru
      _
    %p758 = scmp.le.s32.totalorder 2, %s7
    // Predicated region
    $region29: #{tpu_custom_call.1} parent=5 // pred_check
      %p759 = pneg %p758
    $region30: #{tpu_custom_call.1} parent=5 // pred_check_branch
      %761 = sbr.rel (%p759) target = $region32
    $region31: #{tpu_custom_call.1} parent=5 // pred_region
      %s762 = ssub.s32 %s7, 2
      // Predicated region
      $region33: #{tpu_custom_call.1} parent=31 // pred_check
        %p763 = pneg %p62
      $region34: #{tpu_custom_call.1} parent=31 // pred_check_branch
        %765 = sbr.rel (%p763) target = $region36
      $region35: #{tpu_custom_call.1} parent=31 // pred_region
        %s766 = smul.u32 8, %s13
        %p767 = scmp.lt.s32.totalorder %s766, 15
        %s768 = scalar_select %p767, %s766, 15
        %s769 = smul.addr %s768, 8
        %s770 = scalar_lea.vmem %s1, %s769
      $region36: #{tpu_custom_call.1} parent=31 // pred_fallthru
        _
    $region32: #{tpu_custom_call.1} parent=5 // pred_fallthru
      _
  $region6: #{tpu_custom_call.1} parent=0 // loop_footer
    %s11 = sadd.s32 1, %s7
  $region7: #{tpu_custom_call.1} parent=0 // loop_footer_branch
    %6 = sbr.rel target = $region3
  $region8: #{tpu_custom_call.1} parent=0 // loop_exit
    _

</llo_original>
